<compile_context>
chip_gen: v5e
topology: v5e:2x2
jax: 0.10.0
libtpu: 0.0.40
codegen_flags: <defaults>
</compile_context>

<pallas_src>
import math
import functools

import jax
import jax.numpy as jnp
from jax import lax
from jax.experimental import pallas as pl
from jax.experimental.pallas import tpu as pltpu


def _arcmargin_kernel(*refs, s, cos_m, sin_m, th, mm, easy_margin, use_label):
    if use_label:
        x_ref, w_ref, label_ref, o_ref = refs
    else:
        x_ref, w_ref, o_ref = refs

    # x_ref: (TB, D), w_ref: (TC, D) -- already L2-normalized (and cast) in wrapper.
    # Contract D of both operands: native transposed-RHS MXU matmul (flash-attn
    # q·kᵀ pattern), f32 accumulation.
    cosine = lax.dot_general(
        x_ref[...], w_ref[...],
        dimension_numbers=(((1,), (1,)), ((), ())),
        preferred_element_type=jnp.float32)                      # (TB, TC) f32
    cos_s = cosine * s                                           # s * cosine

    if use_label:
        label = label_ref[...]                                   # (TB, 1) int32
        tc = cosine.shape[1]
        col = (lax.broadcasted_iota(jnp.int32, cosine.shape, 1)
               + pl.program_id(0) * tc)                          # global class id
        is_lab = col == label                                    # (TB, TC)

        # Per-row margin: only the labelled column ever uses phi, so extract that
        # single cosine per row with one masked lane reduction and do sqrt / phi /
        # threshold on a (TB, 1) vector instead of the full tile.
        c_lab = jnp.sum(jnp.where(is_lab, cosine, 0.0),
                        axis=-1, keepdims=True)                  # (TB, 1)
        sine = jnp.sqrt(jnp.clip(1.0 - c_lab * c_lab, 0.0, 1.0))
        phi_s = c_lab * (s * cos_m) - sine * (s * sin_m)         # s * phi
        if easy_margin:
            phi_s = jnp.where(c_lab > 0.0, phi_s, c_lab * s)
        else:
            phi_s = jnp.where(c_lab > th, phi_s, c_lab * s - s * mm)

        # TODO(synk): optionally move label to SMEM via scalar prefetch and gate
        # this select with @pl.when for class tiles containing none of this batch
        # tile's labels (helps when C/TC >> TB).
        out = jnp.where(is_lab, phi_s, cos_s)
    else:
        out = cos_s

    o_ref[...] = out.astype(o_ref.dtype)


def _l2_normalize(v, axis, eps=1e-12):
    # Matches torch F.normalize: v / max(||v||, eps), computed in f32.
    v32 = v.astype(jnp.float32)
    sq = jnp.sum(v32 * v32, axis=axis, keepdims=True)
    return v32 * lax.rsqrt(jnp.maximum(sq, eps * eps))


def _pick_tile(dim, target, align):
    if dim <= target:
        return dim
    return max(align, (target // align) * align)


def arc_margin_product(x, weight, label=None, *, s=30.0, m=0.5, easy_margin=False,
                       compute_dtype=jnp.bfloat16, out_dtype=jnp.float32,
                       block_b=256, block_c=4096):
    """x: (B, in_features), weight: (out_features, in_features), label: (B,) int or
    None. Returns (B, out_features) logits in `out_dtype`."""
    B, D = x.shape
    C, D2 = weight.shape
    assert D == D2
    use_label = label is not None

    cos_m = math.cos(m)
    sin_m = math.sin(m)
    th = math.cos(math.pi - m)
    mm = math.sin(math.pi - m) * m

    # Normalize once in f32 (trivial XLA elementwise work), cast to the matmul
    # dtype at the boundary so the pipelined DMAs carry bf16, not f32.
    xn = _l2_normalize(x, axis=1).astype(compute_dtype)
    wn = _l2_normalize(weight, axis=1).astype(compute_dtype)

    in_bytes = jnp.dtype(compute_dtype).itemsize
    out_bytes = jnp.dtype(out_dtype).itemsize

    TB = _pick_tile(B, block_b, 8)
    TC = _pick_tile(C, block_c, 128)

    # Conservative per-step VMEM footprint: double-buffered pipeline blocks plus
    # full-tile f32/i32 temporaries of the epilogue.  Shrink TC until it fits a
    # ~40 MiB budget (safe on v7x's 64 MiB VMEM; v5e/v6e have 128 MiB).
    def footprint(tb, tc):
        blocks = 2 * (tb * D * in_bytes + tc * D * in_bytes
                      + tb * tc * out_bytes + tb * 4)
        temps = 6 * tb * tc * 4
        return blocks + temps

    budget = 40 << 20
    while TC > 128 and footprint(TB, TC) > budget:
        TC = max(128, ((TC // 2) // 128) * 128)

    # Class axis OUTER: the W block index is constant while the batch axis
    # iterates, so Pallas skips the W DMA -> W is read from HBM exactly once.
    grid = (pl.cdiv(C, TC), pl.cdiv(B, TB))

    in_specs = [pl.BlockSpec((TB, D), lambda ci, bi: (bi, 0)),
                pl.BlockSpec((TC, D), lambda ci, bi: (ci, 0))]
    args = [xn, wn]
    if use_label:
        in_specs.append(pl.BlockSpec((TB, 1), lambda ci, bi: (bi, 0)))
        args.append(label.reshape(B, 1).astype(jnp.int32))
    out_spec = pl.BlockSpec((TB, TC), lambda ci, bi: (bi, ci))

    vmem_limit = int(max(footprint(TB, TC) + (4 << 20), 16 << 20))

    kernel = functools.partial(
        _arcmargin_kernel, s=float(s), cos_m=cos_m, sin_m=sin_m, th=th, mm=mm,
        easy_margin=easy_margin, use_label=use_label)

    return pl.pallas_call(
        kernel,
        out_shape=jax.ShapeDtypeStruct((B, C), out_dtype),
        grid_spec=pltpu.PrefetchScalarGridSpec(
            num_scalar_prefetch=0,
            grid=grid,
            in_specs=in_specs,
            out_specs=out_spec),
        compiler_params=pltpu.CompilerParams(
            dimension_semantics=("parallel", "parallel"),
            vmem_limit_bytes=vmem_limit),
    )(*args)


def _xavier_uniform(key, shape):
    # nn.init.xavier_uniform_ on (out_features, in_features)
    fan_out, fan_in = shape
    limit = math.sqrt(6.0 / (fan_in + fan_out))
    return jax.random.uniform(key, shape, jnp.float32, -limit, limit)


def _ref(x, w, label, s=30.0, m=0.5, easy_margin=False):
    eps = 1e-12
    xn = x / jnp.maximum(jnp.linalg.norm(x, axis=1, keepdims=True), eps)
    wn = w / jnp.maximum(jnp.linalg.norm(w, axis=1, keepdims=True), eps)
    cosine = xn @ wn.T
    sine = jnp.sqrt(jnp.clip(1.0 - cosine ** 2, 0.0, 1.0))
    phi = cosine * math.cos(m) - sine * math.sin(m)
    if easy_margin:
        phi = jnp.where(cosine > 0.0, phi, cosine)
    else:
        phi = jnp.where(cosine > math.cos(math.pi - m), phi,
                        cosine - math.sin(math.pi - m) * m)
    if label is None:
        return s * cosine
    one_hot = jax.nn.one_hot(label, cosine.shape[1], dtype=cosine.dtype)
    return s * (one_hot * phi + (1.0 - one_hot) * cosine)


if __name__ == "__main__":
    key = jax.random.PRNGKey(0)
    kx, kw, kl, kx2, kw2, kl2, kx3, kw3, kl3 = jax.random.split(key, 9)

    # --- Test A/B/D: small single-tile shapes -------------------------------
    B, D, C = 8, 32, 16
    x = jax.random.normal(kx, (B, D), jnp.float32)
    w = _xavier_uniform(kw, (C, D))
    label = jax.random.randint(kl, (B,), 0, C, jnp.int32)
    expected = _ref(x, w, label)

    # A) float32 compute: tight check
    out_f32 = arc_margin_product(x, w, label, compute_dtype=jnp.float32)
    jax.block_until_ready(out_f32)
    assert jnp.allclose(out_f32, expected, atol=2e-3, rtol=2e-3), (
        "f32 mismatch", float(jnp.max(jnp.abs(out_f32 - expected))))

    # B) default bf16 matmul + bf16 output: loose check
    out_bf16 = arc_margin_product(x, w, label, out_dtype=jnp.bfloat16)
    jax.block_until_ready(out_bf16)
    assert jnp.allclose(out_bf16.astype(jnp.float32), expected,
                        atol=0.25, rtol=0.02), (
        "bf16 mismatch",
        float(jnp.max(jnp.abs(out_bf16.astype(jnp.float32) - expected))))

    # D) no-label (inference) path
    out_nolabel = arc_margin_product(x, w, None, compute_dtype=jnp.float32)
    jax.block_until_ready(out_nolabel)
    exp_nolabel = _ref(x, w, None)
    assert jnp.allclose(out_nolabel, exp_nolabel, atol=2e-3, rtol=2e-3), (
        "no-label mismatch", float(jnp.max(jnp.abs(out_nolabel - exp_nolabel))))

    # --- Test C: exercise the tiled grid (2 class tiles x 2 batch tiles) ----
    B2, C2 = 16, 256
    x2 = jax.random.normal(kx2, (B2, D), jnp.float32)
    w2 = _xavier_uniform(kw2, (C2, D))
    label2 = jax.random.randint(kl2, (B2,), 0, C2, jnp.int32)
    out_tiled = arc_margin_product(x2, w2, label2, compute_dtype=jnp.float32,
                                   block_b=8, block_c=128)
    jax.block_until_ready(out_tiled)
    exp_tiled = _ref(x2, w2, label2)
    assert jnp.allclose(out_tiled, exp_tiled, atol=2e-3, rtol=2e-3), (
        "tiled mismatch", float(jnp.max(jnp.abs(out_tiled - exp_tiled))))

    # --- Test E: non-divisible B and C (edge-block padding path) ------------
    B3, C3 = 10, 200
    x3 = jax.random.normal(kx3, (B3, D), jnp.float32)
    w3 = _xavier_uniform(kw3, (C3, D))
    label3 = jax.random.randint(kl3, (B3,), 0, C3, jnp.int32)
    out_edge = arc_margin_product(x3, w3, label3, compute_dtype=jnp.float32,
                                  block_b=8, block_c=128)
    jax.block_until_ready(out_edge)
    exp_edge = _ref(x3, w3, label3)
    assert jnp.allclose(out_edge, exp_edge, atol=2e-3, rtol=2e-3), (
        "edge mismatch", float(jnp.max(jnp.abs(out_edge - exp_edge))))

    print("KERNEL_OK")
</pallas_src>

<mosaic_0001>
module attributes {stable_mosaic.version = 11 : i64} {
  func.func @_arcmargin_kernel(%arg0: i32, %arg1: i32, %arg2: memref<8x32xf32, #tpu.memory_space<vmem>>, %arg3: memref<16x32xf32, #tpu.memory_space<vmem>>, %arg4: memref<8x1xi32, #tpu.memory_space<vmem>>, %arg5: memref<8x16xf32, #tpu.memory_space<vmem>>) attributes {dimension_semantics = [#tpu.dimension_semantics<parallel>, #tpu.dimension_semantics<parallel>], iteration_bounds = array<i64: 1, 1>, scalar_prefetch = 0 : i64, scratch_operands = 0 : i64, tpu.core_type = #tpu.core_type<tc>, window_params = [{transform_indices = @transform_0, window_bounds = array<i64: 8, 32>}, {transform_indices = @transform_1, window_bounds = array<i64: 16, 32>}, {transform_indices = @transform_2, window_bounds = array<i64: 8, 1>}, {transform_indices = @transform_3, window_bounds = array<i64: 8, 16>}]} {
    %c0 = arith.constant 0 : index
    %c0_0 = arith.constant 0 : index
    %0 = vector.load %arg2[%c0, %c0_0] : memref<8x32xf32, #tpu.memory_space<vmem>>, vector<8x32xf32>
    %c0_1 = arith.constant 0 : index
    %c0_2 = arith.constant 0 : index
    %1 = vector.load %arg3[%c0_1, %c0_2] : memref<16x32xf32, #tpu.memory_space<vmem>>, vector<16x32xf32>
    %cst = arith.constant dense<0.000000e+00> : vector<8x16xf32>
    %2 = tpu.matmul %0, %1, %cst {dimension_numbers = #tpu.dot_dimension_numbers<[1], [1], [0], [0], [0, 0, 1, 0], [], []>} : vector<8x32xf32>, vector<16x32xf32>, vector<8x16xf32> -> vector<8x16xf32>
    %cst_3 = arith.constant 3.000000e+01 : f32
    %3 = vector.broadcast %cst_3 : f32 to vector<8x16xf32>
    %4 = arith.mulf %2, %3 : vector<8x16xf32>
    %c0_4 = arith.constant 0 : index
    %c0_5 = arith.constant 0 : index
    %5 = vector.load %arg4[%c0_4, %c0_5] : memref<8x1xi32, #tpu.memory_space<vmem>>, vector<8x1xi32>
    %6 = tpu.iota {dimensions = array<i32: 1>} : vector<8x16xi32>
    %c16_i32 = arith.constant 16 : i32
    %7 = arith.muli %arg0, %c16_i32 : i32
    %8 = vector.broadcast %7 : i32 to vector<8x16xi32>
    %9 = arith.addi %6, %8 : vector<8x16xi32>
    %10 = vector.broadcast %5 : vector<8x1xi32> to vector<8x16xi32>
    %11 = arith.cmpi eq, %9, %10 : vector<8x16xi32>
    %cst_6 = arith.constant 0.000000e+00 : f32
    %12 = vector.broadcast %cst_6 : f32 to vector<8x16xf32>
    %13 = arith.select %11, %2, %12 : vector<8x16xi1>, vector<8x16xf32>
    %cst_7 = arith.constant dense<0.000000e+00> : vector<8xf32>
    %14 = vector.multi_reduction <add>, %13, %cst_7 [1] : vector<8x16xf32> to vector<8xf32>
    %15 = vector.shape_cast %14 : vector<8xf32> to vector<8x1xf32>
    %16 = arith.mulf %15, %15 : vector<8x1xf32>
    %cst_8 = arith.constant 1.000000e+00 : f32
    %17 = vector.broadcast %cst_8 : f32 to vector<8x1xf32>
    %18 = arith.subf %17, %16 : vector<8x1xf32>
    %cst_9 = arith.constant 0.000000e+00 : f32
    %cst_10 = arith.constant 1.000000e+00 : f32
    %19 = vector.broadcast %cst_9 : f32 to vector<8x1xf32>
    %20 = arith.maximumf %19, %18 : vector<8x1xf32>
    %21 = vector.broadcast %cst_10 : f32 to vector<8x1xf32>
    %22 = arith.minimumf %21, %20 : vector<8x1xf32>
    %23 = math.sqrt %22 : vector<8x1xf32>
    %cst_11 = arith.constant 26.3274765 : f32
    %24 = vector.broadcast %cst_11 : f32 to vector<8x1xf32>
    %25 = arith.mulf %15, %24 : vector<8x1xf32>
    %cst_12 = arith.constant 14.3827658 : f32
    %26 = vector.broadcast %cst_12 : f32 to vector<8x1xf32>
    %27 = arith.mulf %23, %26 : vector<8x1xf32>
    %28 = arith.subf %25, %27 : vector<8x1xf32>
    %cst_13 = arith.constant -0.87758255 : f32
    %29 = vector.broadcast %cst_13 : f32 to vector<8x1xf32>
    %30 = arith.cmpf ogt, %15, %29 : vector<8x1xf32>
    %cst_14 = arith.constant 3.000000e+01 : f32
    %31 = vector.broadcast %cst_14 : f32 to vector<8x1xf32>
    %32 = arith.mulf %15, %31 : vector<8x1xf32>
    %cst_15 = arith.constant 7.19138288 : f32
    %33 = vector.broadcast %cst_15 : f32 to vector<8x1xf32>
    %34 = arith.subf %32, %33 : vector<8x1xf32>
    %35 = arith.select %30, %28, %34 : vector<8x1xi1>, vector<8x1xf32>
    %36 = vector.shape_cast %35 : vector<8x1xf32> to vector<8x1xf32>
    %37 = vector.broadcast %36 : vector<8x1xf32> to vector<8x16xf32>
    %38 = arith.select %11, %37, %4 : vector<8x16xi1>, vector<8x16xf32>
    %c0_16 = arith.constant 0 : index
    %c0_17 = arith.constant 0 : index
    %39 = vector.load %arg5[%c0_16, %c0_17] : memref<8x16xf32, #tpu.memory_space<vmem>>, vector<8x16xf32>
    tpu.vector_store %arg5[%c0_16, %c0_17], %38 {strides = array<i32>} : memref<8x16xf32, #tpu.memory_space<vmem>>, vector<8x16xf32>,
    return
  }
  func.func @transform_0(%arg0: i32, %arg1: i32) -> (i32, i32) {
    %c0_i32 = arith.constant 0 : i32
    %c0_i32_0 = arith.constant 0 : i32
    return %arg1, %c0_i32 : i32, i32
  }
  func.func @transform_1(%arg0: i32, %arg1: i32) -> (i32, i32) {
    %c0_i32 = arith.constant 0 : i32
    %c0_i32_0 = arith.constant 0 : i32
    return %arg0, %c0_i32 : i32, i32
  }
  func.func @transform_2(%arg0: i32, %arg1: i32) -> (i32, i32) {
    %c0_i32 = arith.constant 0 : i32
    %c0_i32_0 = arith.constant 0 : i32
    return %arg1, %c0_i32 : i32, i32
  }
  func.func @transform_3(%arg0: i32, %arg1: i32) -> (i32, i32) {
    %c0_i32 = arith.constant 0 : i32
    return %arg1, %arg0 : i32, i32
  }
}

</mosaic_0001>

<llo_original>
// kernel: tpu_custom_call.1
$region0: #{tpu_custom_call.1}
  #allocation0 [shape = 'u32[]', space=smem, size = 0x4, offset = 0x4, fixed_abs, tag = 'smem constant byte address 0x4 - core index']
  #allocation1 [shape = 'u32[72,128]{1,0:T(1,128)}', space=vmem, size = 0x9000, scoped, tag = 'internal scratch']
  %s0 = inlined_call_operand.vmem [shape: f32[8,32], index: 0, kind: input, shape index: {}]
  %s1 = inlined_call_operand.hbm [shape: f32[16,32], index: 1, kind: input, shape index: {}]
  %s2 = inlined_call_operand.vmem [shape: s32[8,1], index: 2, kind: input, shape index: {}]
  %s3 = inlined_call_operand.hbm [shape: f32[8,16], index: 3, kind: output, shape index: {}]
  %s4 = sld [smem:[#allocation0]]
  $region26: #{tpu_custom_call.1} parent=0
    _
  %s6 = ssub.s32 1, %s4
  %s7 = scalar_select 0, %s6, %s4
  $region1: #{tpu_custom_call.1} parent=0
    #allocation2 [shape = 'u8[8192]{0}', space=vmem, size = 0x2000, scoped, tag = 'input window, operand 1, single buffered']
    #allocation3 [shape = 's32[1]{0}', space=sflag, size = 0x4, scoped, tag = 'scoped memory for tpu_custom_call.1']
    #allocation4 [shape = 's32[1]{0}', space=sflag, size = 0x4, scoped, tag = 'scoped memory for tpu_custom_call.1']
    #allocation5 [shape = 'u8[4096]{0}', space=vmem, size = 0x1000, scoped, tag = 'output window, operand 0, single buffered']
    %8 = vsyncpa [#allocation3], 0
    %9 = vsyncpa [#allocation4], 0
    // Predicated region
    $region2: #{tpu_custom_call.1} parent=1 // pred_check
      _
    $region3: #{tpu_custom_call.1} parent=1 // pred_check_branch
      %11 = sbr.rel (0) target = $region5
    $region4: #{tpu_custom_call.1} parent=1 // pred_region
      _
    $region5: #{tpu_custom_call.1} parent=1 // pred_fallthru
      _
    // Predicated region
    $region6: #{tpu_custom_call.1} parent=1 // pred_check
      _
    $region7: #{tpu_custom_call.1} parent=1 // pred_check_branch
      %13 = sbr.rel (0) target = $region9
    $region8: #{tpu_custom_call.1} parent=1 // pred_region
      %15 = vsyncadd [#allocation3], 0
      %s16 = sshll.u32 %s1, 4
      %s17 = int_to_ptr.hbm [resolvable:$true] %s16
      %s18 = sshll.u32 [#allocation2], 4
      %s19 = int_to_ptr.vmem [resolvable:$true] %s18
      %24 = dma.hbm_to_vmem [thread:$0]  %s17, 256, %s19, [#allocation3], 128, 128, 8
    $region9: #{tpu_custom_call.1} parent=1 // pred_fallthru
      _
    // Predicated region
    $region10: #{tpu_custom_call.1} parent=1 // pred_check
      _
    $region11: #{tpu_custom_call.1} parent=1 // pred_check_branch
      %26 = sbr.rel (0) target = $region13
    $region12: #{tpu_custom_call.1} parent=1 // pred_region
      _
    $region13: #{tpu_custom_call.1} parent=1 // pred_fallthru
      _
    // Predicated region
    $region14: #{tpu_custom_call.1} parent=1 // pred_check
      _
    $region15: #{tpu_custom_call.1} parent=1 // pred_check_branch
      %28 = sbr.rel (0) target = $region17
    $region16: #{tpu_custom_call.1} parent=1 // pred_region
      %30 = dma.done [#allocation3], 256
    $region17: #{tpu_custom_call.1} parent=1 // pred_fallthru
      _
    %v31 = vld [vmem:[%s0] sm:$0xff]
    %v32 = vld [vmem:[#allocation2] sm:$0xff]
    %v33 = vld [vmem:[#allocation2 + $0x8] sm:$0xff]
    %vm34 = vcmask 261120
    %v36 = vsel %vm34, %v31, 0
    %v39 = vsel %vm34, %v32, 0
    %v42 = vsel %vm34, %v33, 0
    %44 = vmatpush.xpose.msra.mxu0 0.0
    %45 = vmatpush.xpose.msra.mxu0 0.0
    %46 = vmatpush.xpose.msra.mxu0 0.0
    %47 = vmatpush.xpose.msra.mxu0 0.0
    %48 = vmatpush.xpose.msra.mxu0 0.0
    %49 = vmatpush.xpose.msra.mxu0 0.0
    %50 = vmatpush.xpose.msra.mxu0 0.0
    %51 = vmatpush.xpose.msra.mxu0 0.0
    %52 = vmatpush.xpose.msra.mxu0 0.0
    %53 = vmatpush.xpose.msra.mxu0 0.0
    %54 = vmatpush.xpose.msra.mxu0 0.0
    %55 = vmatpush.xpose.msra.mxu0 0.0
    %56 = vmatpush.xpose.msra.mxu0 0.0
    %57 = vmatpush.xpose.msra.mxu0 0.0
    %58 = vmatpush.xpose.msra.mxu0 %v42
    %59 = vmatpush.xpose.msra.mxu0 %v39
    %60 = vmatmul.f32.gmra.mxu0 %v36
    %v61 = vpop.f32.mrf.mxu0
    %v62 = vadd.f32 0.0, %v61
    %63 = vdwg.mxu0
    %v64 = vmul.f32 %v62, 30.0
    %v65 = vld [vmem:[%s2] sm:$0xff]
    %v66 = vlaneseq
    %v67 = vand.u32 %v66, 127
    %s68 = smul.u32 0, 16
    %v69 = vstv %s68
    %v70 = vadd.s32 %v67, %v69
    %71 = vset.pattern.permute.xlu0 0
    %72 = vperm.xlu0 %71, %v65
    %v73 = vpop.permute.xlu0 %72
    %vm74 = vcmp.eq.s32.totalorder %v70, %v73
    %v75 = vsel %vm74, %v62, 0.0
    %vm76 = vcmask 130048
    %v77 = vsel %vm76, %v75, 0.0
    %78 = vadd.xlane.f32.xlu0 %v77
    %v79 = vpop.xlane.xlu0 %78
    %v80 = vmul.f32 %v79, %v79
    %v81 = vsub.f32 1.0, %v80
    %v82 = vmax.f32 %v81, 0.0
    %v83 = vmin.f32 %v82, 1.0
    %v84 = vrsqrt.pop %v83
    %v85 = vmul.f32 %v84, %v83
    %v86 = vmul.f32 %v85, %v84
    %v87 = vmul.f32 0.5, %v86
    %v88 = vsub.f32 1.5, %v87
    %v89 = vmul.f32 %v84, %v88
    %v90 = vmul.f32 %v83, %v89
    %vm91 = vcmp.eq.f32.partialorder %v83, inf
    %v92 = vsel %vm91, %v83, %v90
    %vm93 = vcmp.eq.f32.partialorder %v83, 0.0
    %v94 = vand.u32 %v83, 2147483648
    %v95 = vsel %vm93, %v94, %v92
    %v96 = vmul.f32 %v79, 26.327477
    %v97 = vmul.f32 %v95, 14.382766
    %v98 = vsub.f32 %v96, %v97
    %vm99 = vcmp.gt.f32.partialorder %v79, -0.87758255
    %v100 = vmul.f32 %v79, 30.0
    %v101 = vsub.f32 %v100, 7.191383
    %v102 = vsel %vm99, %v98, %v101
    %v103 = vsel %vm74, %v102, %v64
    %104 = vst.msk [vmem:[#allocation5] sm:$0xff] %vm76, %v103
    // Predicated region
    $region18: #{tpu_custom_call.1} parent=1 // pred_check
      _
    $region19: #{tpu_custom_call.1} parent=1 // pred_check_branch
      %106 = sbr.rel (0) target = $region21
    $region20: #{tpu_custom_call.1} parent=1 // pred_region
      %108 = vsyncadd [#allocation4], 0
      %s110 = sshll.u32 [#allocation5], 4
      %s111 = int_to_ptr.vmem [resolvable:$true] %s110
      %s112 = sshll.u32 %s3, 4
      %s113 = int_to_ptr.hbm [resolvable:$true] %s112
      %115 = dma.vmem_to_hbm [thread:$0]  %s111, 128, %s113, [#allocation4]
    $region21: #{tpu_custom_call.1} parent=1 // pred_fallthru
      _
    // Predicated region
    $region22: #{tpu_custom_call.1} parent=1 // pred_check
      _
    $region23: #{tpu_custom_call.1} parent=1 // pred_check_branch
      %117 = sbr.rel (0) target = $region25
    $region24: #{tpu_custom_call.1} parent=1 // pred_region
      %119 = dma.done [#allocation4], 128
    $region25: #{tpu_custom_call.1} parent=1 // pred_fallthru
      _
    %120 = vsyncpa [#allocation3], 1
    %121 = vsyncpa [#allocation4], 1

</llo_original>
